<compile_context>
chip_gen: v7x
topology: tpu7x:2x2x1
jax: 0.10.0
libtpu: 0.0.40
codegen_flags: <defaults>
</compile_context>

<pallas_src>
import jax
import jax.numpy as jnp
from jax.experimental import pallas as pl
from jax.experimental.pallas import tpu as pltpu


def _round_up(x: int, m: int) -> int:
    return ((x + m - 1) // m) * m


def _logreg_kernel(x_ref, w_ref, b_ref, o_ref):
    # x_ref: (TB, F) batch tile   (VMEM, pipelined over the grid)
    # w_ref: (1, F)  weight row   (VMEM, resident across grid steps)
    # b_ref: (1, 1)  scalar bias  (SMEM)
    # o_ref: (TB, 1) sigmoid output
    x = x_ref[...]
    w = w_ref[...]
    # Exact f32 dot: VPU multiply + cross-lane reduction (no MXU bf16 rounding).
    z = jnp.sum(x * w, axis=-1, keepdims=True) + b_ref[0, 0]
    # Exact sigmoid: exp on the EUP, true divide (no approximate reciprocal).
    o_ref[...] = (1.0 / (1.0 + jnp.exp(-z))).astype(o_ref.dtype)


def logistic_regression_forward(x, w_t, b):
    """x: (B, F) f32, w_t: (F, 1) f32, b: (1, 1) f32 -> (B, 1) f32."""
    B, F = x.shape
    x = x.astype(jnp.float32)

    # Batch tile: sublane-aligned (multiple of 8), capped at 8192 rows so each x block is
    # <= ~1 MiB f32 (fits default scoped VMEM with double buffering on v5e/v6e/v7x) while
    # amortizing per-grid-step overhead for large batches.
    TB = max(8, min(8192, _round_up(B, 8)))
    B_pad = _round_up(B, TB)
    if B_pad != B:
        # Padded rows compute sigmoid(b) and are sliced off at the end.
        x = jnp.pad(x, ((0, B_pad - B), (0, 0)))

    w_row = w_t.reshape(1, F).astype(jnp.float32)            # (1, F)
    b_smem = jnp.asarray(b, dtype=jnp.float32).reshape(1, 1)  # (1, 1) scalar for SMEM

    grid = (B_pad // TB,)
    out = pl.pallas_call(
        _logreg_kernel,
        out_shape=jax.ShapeDtypeStruct((B_pad, 1), jnp.float32),
        grid_spec=pltpu.PrefetchScalarGridSpec(
            num_scalar_prefetch=0,
            grid=grid,
            in_specs=[
                pl.BlockSpec((TB, F), lambda i: (i, 0)),            # pipelined x tiles
                pl.BlockSpec((1, F), lambda i: (0, 0)),             # weight, VMEM-resident
                pl.BlockSpec(memory_space=pltpu.MemorySpace.SMEM),  # scalar bias
            ],
            out_specs=pl.BlockSpec((TB, 1), lambda i: (i, 0)),
        ),
        compiler_params=pltpu.CompilerParams(
            dimension_semantics=("parallel",),   # batch tiles are independent
        ),
    )(x, w_row, b_smem)

    return out[:B]


def reference_forward(x, w_t, b):
    # HIGHEST precision so the reference itself is full-f32 (TPU default matmul
    # precision is reduced and would otherwise dominate the comparison error).
    z = jnp.dot(x, w_t, precision=jax.lax.Precision.HIGHEST) + b
    return jax.nn.sigmoid(z)


if __name__ == "__main__":
    key = jax.random.PRNGKey(0)
    kx, kw, kb = jax.random.split(key, 3)

    batch = 8
    n_input_features = 32  # matches LogisticRegression(n_input_features)

    x = jax.random.normal(kx, (batch, n_input_features), dtype=jnp.float32)

    # Deterministic parameter init mimicking nn.Linear(n_input_features, 1):
    # weight (1, F) ~ U(-1/sqrt(F), 1/sqrt(F)), bias (1,) same range.
    bound = 1.0 / (n_input_features ** 0.5)
    weight = jax.random.uniform(
        kw, (1, n_input_features), dtype=jnp.float32, minval=-bound, maxval=bound
    )
    bias = jax.random.uniform(
        kb, (1,), dtype=jnp.float32, minval=-bound, maxval=bound
    )

    w_t = weight.T                      # (F, 1)
    b = bias.reshape(1, 1)              # (1, 1)

    y = logistic_regression_forward(x, w_t, b)
    y = jax.block_until_ready(y)
    y_ref = reference_forward(x, w_t, b)
    assert y.shape == (batch, 1)
    assert jnp.allclose(y, y_ref, atol=1e-3, rtol=1e-3), float(jnp.max(jnp.abs(y - y_ref)))

    # Extra check: non-aligned batch exercises the pad/slice path.
    batch2 = 777
    x2 = jax.random.normal(jax.random.PRNGKey(1), (batch2, n_input_features), jnp.float32)
    y2 = jax.block_until_ready(logistic_regression_forward(x2, w_t, b))
    y2_ref = reference_forward(x2, w_t, b)
    assert y2.shape == (batch2, 1)
    assert jnp.allclose(y2, y2_ref, atol=1e-3, rtol=1e-3), float(jnp.max(jnp.abs(y2 - y2_ref)))

    print("KERNEL_OK")
</pallas_src>

<mosaic_0001>
module attributes {stable_mosaic.version = 11 : i64} {
  func.func @_logreg_kernel(%arg0: i32, %arg1: memref<8x32xf32, #tpu.memory_space<vmem>>, %arg2: memref<1x32xf32, #tpu.memory_space<vmem>>, %arg3: memref<1x1xf32, #tpu.memory_space<smem>>, %arg4: memref<8x1xf32, #tpu.memory_space<vmem>>) attributes {dimension_semantics = [#tpu.dimension_semantics<parallel>], iteration_bounds = array<i64: 1>, scalar_prefetch = 0 : i64, scratch_operands = 0 : i64, tpu.core_type = #tpu.core_type<tc>, window_params = [{transform_indices = @transform_0, window_bounds = array<i64: 8, 32>}, {pipeline_mode = #tpu.pipeline_mode<synchronous>, transform_indices = @transform_1, window_bounds = array<i64: 1, 32>}, {transform_indices = @transform_2, window_bounds = array<i64: 1, 1>}, {transform_indices = @transform_3, window_bounds = array<i64: 8, 1>}]} {
    %c0 = arith.constant 0 : index
    %c0_0 = arith.constant 0 : index
    %0 = vector.load %arg1[%c0, %c0_0] : memref<8x32xf32, #tpu.memory_space<vmem>>, vector<8x32xf32>
    %c0_1 = arith.constant 0 : index
    %c0_2 = arith.constant 0 : index
    %1 = vector.load %arg2[%c0_1, %c0_2] : memref<1x32xf32, #tpu.memory_space<vmem>>, vector<1x32xf32>
    %2 = vector.broadcast %1 : vector<1x32xf32> to vector<8x32xf32>
    %3 = arith.mulf %0, %2 : vector<8x32xf32>
    %cst = arith.constant dense<0.000000e+00> : vector<8xf32>
    %4 = vector.multi_reduction <add>, %3, %cst [1] : vector<8x32xf32> to vector<8xf32>
    %5 = vector.shape_cast %4 : vector<8xf32> to vector<8x1xf32>
    %c0_3 = arith.constant 0 : index
    %c0_4 = arith.constant 0 : index
    %6 = memref.load %arg3[%c0_3, %c0_4] : memref<1x1xf32, #tpu.memory_space<smem>>
    %7 = vector.broadcast %6 : f32 to vector<8x1xf32>
    %8 = arith.addf %5, %7 : vector<8x1xf32>
    %cst_5 = arith.constant 0.000000e+00 : f32
    %9 = vector.broadcast %cst_5 : f32 to vector<8x1xf32>
    %10 = arith.subf %9, %8 : vector<8x1xf32>
    %11 = math.exp %10 : vector<8x1xf32>
    %cst_6 = arith.constant 1.000000e+00 : f32
    %12 = vector.broadcast %cst_6 : f32 to vector<8x1xf32>
    %13 = arith.addf %12, %11 : vector<8x1xf32>
    %cst_7 = arith.constant 1.000000e+00 : f32
    %14 = vector.broadcast %cst_7 : f32 to vector<8x1xf32>
    %15 = arith.divf %14, %13 : vector<8x1xf32>
    %c0_8 = arith.constant 0 : index
    %c0_9 = arith.constant 0 : index
    %16 = vector.load %arg4[%c0_8, %c0_9] : memref<8x1xf32, #tpu.memory_space<vmem>>, vector<8x1xf32>
    tpu.vector_store %arg4[%c0_8, %c0_9], %15 {strides = array<i32>} : memref<8x1xf32, #tpu.memory_space<vmem>>, vector<8x1xf32>,
    return
  }
  func.func @transform_0(%arg0: i32) -> (i32, i32) {
    %c0_i32 = arith.constant 0 : i32
    %c0_i32_0 = arith.constant 0 : i32
    return %arg0, %c0_i32 : i32, i32
  }
  func.func @transform_1(%arg0: i32) -> (i32, i32) {
    %c0_i32 = arith.constant 0 : i32
    %c0_i32_0 = arith.constant 0 : i32
    %c0_i32_1 = arith.constant 0 : i32
    return %c0_i32, %c0_i32_0 : i32, i32
  }
  func.func @transform_2(%arg0: i32) -> (i32, i32) {
    %c0_i32 = arith.constant 0 : i32
    %c0_i32_0 = arith.constant 0 : i32
    %c0_i32_1 = arith.constant 0 : i32
    return %c0_i32, %c0_i32_0 : i32, i32
  }
  func.func @transform_3(%arg0: i32) -> (i32, i32) {
    %c0_i32 = arith.constant 0 : i32
    %c0_i32_0 = arith.constant 0 : i32
    return %arg0, %c0_i32 : i32, i32
  }
}

</mosaic_0001>

<llo_original>
// kernel: tpu_custom_call.1
$region0: #{tpu_custom_call.1}
  #allocation0 [shape = 'u32[]', space=smem, size = 0x4, offset = 0x4, fixed_abs, tag = 'smem constant byte address 0x4 - core index']
  #allocation1 [shape = 'u32[144,128]{1,0:T(1,128)}', space=vmem, size = 0x12000, scoped, tag = 'internal scratch']
  #allocation2 [shape = 'f32[1,1]{1,0:T(1,128)S(6)}', space=smem, size = 0x200, scoped, tag = 'scoped memory for tpu_custom_call.1']
  %s0 = inlined_call_operand.hbm [shape: f32[8,32], index: 0, kind: input, shape index: {}]
  %s1 = inlined_call_operand.vmem [shape: f32[1,32], index: 1, kind: input, shape index: {}]
  %s2 = inlined_call_operand.<no memory space> [shape: f32[1,1], index: 2, kind: input, shape index: {}]
  %s3 = inlined_call_operand.vmem [shape: f32[8,1], index: 3, kind: output, shape index: {}]
  %s4 = sld [smem:[#allocation0]]
  $region26: #{tpu_custom_call.1} parent=0
    _
  %s6 = ssub.s32 1, %s4
  %s7 = scalar_select 0, %s6, %s4
  %8 = sst [smem:[#allocation2]] %s2
  $region1: #{tpu_custom_call.1} parent=0
    #allocation3 [shape = 'u8[4096]{0}', space=vmem, size = 0x1000, scoped, tag = 'input window, operand 0, single buffered']
    #allocation4 [shape = 's32[1]{0}', space=sflag, size = 0x4, scoped, tag = 'scoped memory for tpu_custom_call.1']
    %9 = vsyncpa [#allocation4], 0
    // Predicated region
    $region2: #{tpu_custom_call.1} parent=1 // pred_check
      _
    $region3: #{tpu_custom_call.1} parent=1 // pred_check_branch
      %11 = sbr.rel (0) target = $region5
    $region4: #{tpu_custom_call.1} parent=1 // pred_region
      %s13 = ssub.s32 128, 128
      %14 = vsyncadd [#allocation4], %s13
      %s16 = sshll.u32 [#allocation3], 4
      %s17 = int_to_ptr.vmem [resolvable:$true] %s16
      %19 = dma.hbm_to_vmem [thread:$0]  %s0, 128, %s17, [#allocation4]
    $region5: #{tpu_custom_call.1} parent=1 // pred_fallthru
      _
    // Predicated region
    $region6: #{tpu_custom_call.1} parent=1 // pred_check
      _
    $region7: #{tpu_custom_call.1} parent=1 // pred_check_branch
      %21 = sbr.rel (0) target = $region9
    $region8: #{tpu_custom_call.1} parent=1 // pred_region
      _
    $region9: #{tpu_custom_call.1} parent=1 // pred_fallthru
      _
    // Predicated region
    $region10: #{tpu_custom_call.1} parent=1 // pred_check
      _
    $region11: #{tpu_custom_call.1} parent=1 // pred_check_branch
      %23 = sbr.rel (0) target = $region13
    $region12: #{tpu_custom_call.1} parent=1 // pred_region
      _
    $region13: #{tpu_custom_call.1} parent=1 // pred_fallthru
      _
    // Predicated region
    $region14: #{tpu_custom_call.1} parent=1 // pred_check
      _
    $region15: #{tpu_custom_call.1} parent=1 // pred_check_branch
      %25 = sbr.rel (0) target = $region17
    $region16: #{tpu_custom_call.1} parent=1 // pred_region
      %26 = dma.done [#allocation4], 128
    $region17: #{tpu_custom_call.1} parent=1 // pred_fallthru
      _
    %v27 = vld [vmem:[#allocation3] sm:$0xff]
    %v28 = vld [vmem:[%s1] sm:$0x1]
    %v30 = vlaneseq
    %v31 = vshrl.u32 %v30, 7
    %v32 = vsub.s32 0, %v31
    %v33 = vrot.slane %v28, %v32
    %v35 = vmul.f32 %v27, %v33
    %vm36 = vcmask 261120
    %v37 = vsel %vm36, %v35, 0.0
    %38 = vadd.xlane.f32.xlu0 %v37
    %v39 = vpop.xlane.xlu0 %38
    %s40 = sld [smem:[#allocation2]]
    %v41 = vstv %s40
    %v42 = vadd.f32 %v39, %v41
    %v43 = vsub.f32 0.0, %v42
    %v44 = vmul.f32 %v43, 1.442695
    %v45 = vpow.pop %v44
    %v46 = vadd.f32 %v45, 1.0
    %v47 = vrcp.pop %v46
    %v48 = vmul.f32 1.0, %v47
    %vm49 = vcmask 7168
    %50 = vst.msk [vmem:[%s3] sm:$0xff] %vm49, %v48
    // Predicated region
    $region18: #{tpu_custom_call.1} parent=1 // pred_check
      _
    $region19: #{tpu_custom_call.1} parent=1 // pred_check_branch
      %52 = sbr.rel (0) target = $region21
    $region20: #{tpu_custom_call.1} parent=1 // pred_region
      _
    $region21: #{tpu_custom_call.1} parent=1 // pred_fallthru
      _
    // Predicated region
    $region22: #{tpu_custom_call.1} parent=1 // pred_check
      _
    $region23: #{tpu_custom_call.1} parent=1 // pred_check_branch
      %54 = sbr.rel (0) target = $region25
    $region24: #{tpu_custom_call.1} parent=1 // pred_region
      _
    $region25: #{tpu_custom_call.1} parent=1 // pred_fallthru
      _
    %55 = vsyncpa [#allocation4], 1

</llo_original>
